<compile_context>
chip_gen: v7x
topology: tpu7x:2x2x1
jax: 0.10.0
libtpu: 0.0.40
codegen_flags: <defaults>
</compile_context>

<pallas_src>
import functools

import jax
import jax.numpy as jnp
from jax import lax
from jax.experimental import pallas as pl
from jax.experimental.pallas import tpu as pltpu

EPS = 1e-5  # PyTorch default eps for BatchNorm2d / InstanceNorm2d / GroupNorm


# ----------------------------------------------------------------- VMEM budget
def _physical_vmem_bytes():
    try:
        return int(pltpu.get_tpu_info().vmem_capacity_bytes)
    except Exception:
        return 64 * 1024 * 1024  # conservative (v7x-sized) fallback


_PHYS_VMEM = _physical_vmem_bytes()
# Scoped-VMEM limit: ~64 MiB on 128 MiB parts (v5e/v6e), ~48 MiB on v7x (64 MiB).
_VMEM_LIMIT = int(min(_PHYS_VMEM * 3 // 4, 64 * 1024 * 1024))
# Per-block f32-element budget: x block x2 (double-buffer) + out block x2 +
# ~2x for in-kernel f32 temporaries => ~6 blocks live, plus ~4 MiB headroom.
_BLOCK_BUDGET_ELEMS = int(max((_VMEM_LIMIT - (4 << 20)) // 6 // 4, 256 * 1024))
# Prefer >= this many steps on the parallel grid axis (v7x has 2 TensorCores)...
_MIN_PARALLEL_STEPS = 2
# ...but only while each block keeps >= 1 MiB of f32 (amortizes ~0.35us/step).
_MIN_SPLIT_BLOCK_ELEMS = 256 * 1024


# -------------------------------------------------------------- tiling helpers
def _divisors(n):
    return [d for d in range(1, n + 1) if n % d == 0]


def _sublane_multiple(dtype):
    # (8,128) vreg tiling for 32-bit; sub-32-bit dtypes pack along sublanes.
    return max(8, 32 // jnp.dtype(dtype).itemsize)


def _pick_tile(total, per_unit_elems, budget_elems, *, sub_mult=1, lane_mult=1,
               min_steps=1, extra=None):
    """Largest divisor tile of `total` whose block fits `budget_elems`.

    A tile must be a multiple of `sub_mult` (sublane) and `lane_mult` (lane)
    or equal the full extent; `extra(d)` can impose further constraints.
    With `min_steps > 1`, prefer tiles that leave >= min_steps grid steps as
    long as blocks stay >= _MIN_SPLIT_BLOCK_ELEMS.  If nothing fits the budget
    the smallest legal tile is returned (callers treat that as "does not fit").
    """
    cands = [d for d in _divisors(total)
             if (d % sub_mult == 0 or d == total)
             and (d % lane_mult == 0 or d == total)
             and (extra is None or extra(d))]
    fitting = [d for d in cands if d * per_unit_elems <= budget_elems]
    if not fitting:
        return min(cands)
    if min_steps > 1:
        split = [d for d in fitting
                 if total // d >= min_steps
                 and d * per_unit_elems >= _MIN_SPLIT_BLOCK_ELEMS]
        if split:
            return max(split)
    return max(fitting)


def _compiler_params(sem):
    return pltpu.CompilerParams(dimension_semantics=sem,
                                vmem_limit_bytes=_VMEM_LIMIT)


# --------------------------------------------------------------------- kernels
def _bn_onepass_kernel(x_ref, gamma_ref, beta_ref, o_ref):
    # x_ref: (N, Ct, HW); gamma/beta: (1, Ct, 1). Per-channel stats over (N, HW).
    x = x_ref[...].astype(jnp.float32)
    inv_cnt = 1.0 / (x.shape[0] * x.shape[2])
    s = jnp.sum(jnp.sum(x, axis=2, keepdims=True), axis=0, keepdims=True)
    s2 = jnp.sum(jnp.sum(x * x, axis=2, keepdims=True), axis=0, keepdims=True)
    mean = s * inv_cnt
    var = jnp.maximum(s2 * inv_cnt - mean * mean, 0.0)  # guard cancellation
    scale = gamma_ref[...] * lax.rsqrt(var + EPS)
    shift = beta_ref[...] - mean * scale
    o_ref[...] = (x * scale + shift).astype(o_ref.dtype)


def _bn_stats_kernel(x_ref, sum_ref, sumsq_ref):
    # grid = (C/ct, N, HW/hwt); reduction over the inner (n, hw) axes.
    # x_ref: (1, ct, hwt); outputs (1, ct, 1) stay resident across those axes.
    @pl.when(jnp.logical_and(pl.program_id(1) == 0, pl.program_id(2) == 0))
    def _():
        sum_ref[...] = jnp.zeros_like(sum_ref)
        sumsq_ref[...] = jnp.zeros_like(sumsq_ref)

    x = x_ref[...].astype(jnp.float32)
    sum_ref[...] += jnp.sum(x, axis=2, keepdims=True)
    sumsq_ref[...] += jnp.sum(x * x, axis=2, keepdims=True)


def _bn_apply_kernel(inv_cnt, x_ref, sum_ref, sumsq_ref, gamma_ref, beta_ref, o_ref):
    # Fused pass-2: the per-channel glue math (mean/var/scale/shift) is a few
    # ct-sized VPU/EUP ops, free under the DMA stream -- no extra XLA kernels.
    mean = sum_ref[...] * inv_cnt
    var = jnp.maximum(sumsq_ref[...] * inv_cnt - mean * mean, 0.0)
    scale = gamma_ref[...] * lax.rsqrt(var + EPS)
    shift = beta_ref[...] - mean * scale
    o_ref[...] = (x_ref[...].astype(jnp.float32) * scale + shift).astype(o_ref.dtype)


def _rownorm_onepass_kernel(x_ref, o_ref):
    # x_ref: (Rt, L); per-row stats; no affine (InstanceNorm2d default).
    x = x_ref[...].astype(jnp.float32)
    inv_cnt = 1.0 / x.shape[-1]
    mean = jnp.sum(x, axis=-1, keepdims=True) * inv_cnt
    var = jnp.maximum(jnp.sum(x * x, axis=-1, keepdims=True) * inv_cnt
                      - mean * mean, 0.0)
    rstd = lax.rsqrt(var + EPS)
    o_ref[...] = ((x - mean) * rstd).astype(o_ref.dtype)


def _rownorm_affine_onepass_kernel(x_ref, gamma_ref, beta_ref, o_ref):
    # GroupNorm, flattened: x_ref (Rt, Cg*HW); gamma/beta (Rt, Cg*HW) lane-dense.
    x = x_ref[...].astype(jnp.float32)
    inv_cnt = 1.0 / x.shape[-1]
    mean = jnp.sum(x, axis=-1, keepdims=True) * inv_cnt
    var = jnp.maximum(jnp.sum(x * x, axis=-1, keepdims=True) * inv_cnt
                      - mean * mean, 0.0)
    rstd = lax.rsqrt(var + EPS)
    o_ref[...] = (((x - mean) * rstd) * gamma_ref[...] + beta_ref[...]).astype(o_ref.dtype)


def _row_stats_kernel(x_ref, sum_ref, sumsq_ref):
    # grid = (R/rt, L/lt); x_ref (rt, lt); outputs (rt, 1) resident across lt.
    @pl.when(pl.program_id(1) == 0)
    def _():
        sum_ref[...] = jnp.zeros_like(sum_ref)
        sumsq_ref[...] = jnp.zeros_like(sumsq_ref)

    x = x_ref[...].astype(jnp.float32)
    sum_ref[...] += jnp.sum(x, axis=-1, keepdims=True)
    sumsq_ref[...] += jnp.sum(x * x, axis=-1, keepdims=True)


def _rownorm_apply_kernel(inv_cnt, x_ref, sum_ref, sumsq_ref, o_ref):
    mean = sum_ref[...] * inv_cnt
    var = jnp.maximum(sumsq_ref[...] * inv_cnt - mean * mean, 0.0)
    rstd = lax.rsqrt(var + EPS)
    o_ref[...] = ((x_ref[...].astype(jnp.float32) - mean) * rstd).astype(o_ref.dtype)


def _rownorm_affine_apply_kernel(inv_cnt, x_ref, sum_ref, sumsq_ref,
                                 gamma_ref, beta_ref, o_ref):
    mean = sum_ref[...] * inv_cnt
    var = jnp.maximum(sumsq_ref[...] * inv_cnt - mean * mean, 0.0)
    rstd = lax.rsqrt(var + EPS)
    x = x_ref[...].astype(jnp.float32)
    o_ref[...] = (((x - mean) * rstd) * gamma_ref[...] + beta_ref[...]).astype(o_ref.dtype)


# -------------------------------------------------------------------- wrappers
# TODO(synk): BatchNorm2d running_mean/running_var/num_batches_tracked updates are
# training-time module state (side effects), not part of the functional forward here.
# TODO(synk): when HW is not a multiple of 128 (e.g. 7x7, 14x14) the trailing lane
# dim stores are masked; a channels-last (NHWC) variant would be lane-dense but only
# pays off if the producer already emits NHWC.
def batchnorm2d(x, gamma, beta, max_block_elems=None):
    N, C, H, W = x.shape
    HW = H * W
    numel = N * C * HW
    isz = jnp.dtype(x.dtype).itemsize
    budget = _BLOCK_BUDGET_ELEMS if max_block_elems is None else max_block_elems
    sub = _sublane_multiple(x.dtype)

    xf = x.reshape(N, C, HW)
    g = gamma.reshape(1, C, 1).astype(jnp.float32)
    b = beta.reshape(1, C, 1).astype(jnp.float32)

    # --- single-pass channel-tiled path: (N, Ct, HW) block holds full per-channel stats
    ct1 = _pick_tile(C, N * HW, budget, sub_mult=sub, min_steps=_MIN_PARALLEL_STEPS)
    if ct1 * N * HW <= budget:
        out = pl.pallas_call(
            _bn_onepass_kernel,
            out_shape=jax.ShapeDtypeStruct((N, C, HW), x.dtype),
            grid=(C // ct1,),
            in_specs=[
                pl.BlockSpec((N, ct1, HW), lambda c: (0, c, 0)),
                pl.BlockSpec((1, ct1, 1), lambda c: (0, c, 0)),
                pl.BlockSpec((1, ct1, 1), lambda c: (0, c, 0)),
            ],
            out_specs=pl.BlockSpec((N, ct1, HW), lambda c: (0, c, 0)),
            compiler_params=_compiler_params(("parallel",)),
            cost_estimate=pl.CostEstimate(
                flops=10 * numel, transcendentals=C,
                bytes_accessed=2 * numel * isz),
        )(xf, g, b)
        return out.reshape(N, C, H, W)

    # --- two-pass fallback (large activations); HW tiled as well when needed -----
    ct = _pick_tile(C, HW, budget, sub_mult=sub)
    hwt = HW if ct * HW <= budget else _pick_tile(HW, ct, budget, lane_mult=128)
    grid = (C // ct, N, HW // hwt)
    inv_cnt = 1.0 / (N * HW)

    # Pass 1: per-channel sum / sum-of-squares accumulated over (N, HW) tiles.
    sums, sumsqs = pl.pallas_call(
        _bn_stats_kernel,
        out_shape=(jax.ShapeDtypeStruct((1, C, 1), jnp.float32),
                   jax.ShapeDtypeStruct((1, C, 1), jnp.float32)),
        grid=grid,
        in_specs=[pl.BlockSpec((1, ct, hwt), lambda c, n, h: (n, c, h))],
        out_specs=(pl.BlockSpec((1, ct, 1), lambda c, n, h: (0, c, 0)),
                   pl.BlockSpec((1, ct, 1), lambda c, n, h: (0, c, 0))),
        compiler_params=_compiler_params(("parallel", "arbitrary", "arbitrary")),
        cost_estimate=pl.CostEstimate(
            flops=3 * numel, transcendentals=0, bytes_accessed=numel * isz),
    )(xf)

    # Pass 2: fused scale/shift with in-kernel glue math.  C is the OUTER grid
    # axis so the tiny (1, ct, 1) inputs keep their block index (no re-DMA)
    # across the inner n/hw steps.
    out = pl.pallas_call(
        functools.partial(_bn_apply_kernel, inv_cnt),
        out_shape=jax.ShapeDtypeStruct((N, C, HW), x.dtype),
        grid=grid,
        in_specs=[
            pl.BlockSpec((1, ct, hwt), lambda c, n, h: (n, c, h)),
            pl.BlockSpec((1, ct, 1), lambda c, n, h: (0, c, 0)),
            pl.BlockSpec((1, ct, 1), lambda c, n, h: (0, c, 0)),
            pl.BlockSpec((1, ct, 1), lambda c, n, h: (0, c, 0)),
            pl.BlockSpec((1, ct, 1), lambda c, n, h: (0, c, 0)),
        ],
        out_specs=pl.BlockSpec((1, ct, hwt), lambda c, n, h: (n, c, h)),
        compiler_params=_compiler_params(("parallel", "parallel", "parallel")),
        cost_estimate=pl.CostEstimate(
            flops=4 * numel, transcendentals=C, bytes_accessed=2 * numel * isz),
    )(xf, sums, sumsqs, g, b)
    return out.reshape(N, C, H, W)


def instancenorm2d(x, max_block_elems=None):
    N, C, H, W = x.shape
    HW = H * W
    R = N * C
    numel = R * HW
    isz = jnp.dtype(x.dtype).itemsize
    budget = _BLOCK_BUDGET_ELEMS if max_block_elems is None else max_block_elems
    sub = _sublane_multiple(x.dtype)

    xf = x.reshape(R, HW)  # per (n, c) row stats over HW

    rt = _pick_tile(R, HW, budget, sub_mult=sub, min_steps=_MIN_PARALLEL_STEPS)
    if rt * HW <= budget:
        out = pl.pallas_call(
            _rownorm_onepass_kernel,
            out_shape=jax.ShapeDtypeStruct((R, HW), x.dtype),
            grid=(R // rt,),
            in_specs=[pl.BlockSpec((rt, HW), lambda r: (r, 0))],
            out_specs=pl.BlockSpec((rt, HW), lambda r: (r, 0)),
            compiler_params=_compiler_params(("parallel",)),
            cost_estimate=pl.CostEstimate(
                flops=8 * numel, transcendentals=R,
                bytes_accessed=2 * numel * isz),
        )(xf)
        return out.reshape(N, C, H, W)

    # --- two-pass fallback for very large HW: stats accumulated over HW tiles ----
    lt = _pick_tile(HW, rt, budget, lane_mult=128)
    grid = (R // rt, HW // lt)
    inv_cnt = 1.0 / HW

    sums, sumsqs = pl.pallas_call(
        _row_stats_kernel,
        out_shape=(jax.ShapeDtypeStruct((R, 1), jnp.float32),
                   jax.ShapeDtypeStruct((R, 1), jnp.float32)),
        grid=grid,
        in_specs=[pl.BlockSpec((rt, lt), lambda r, l: (r, l))],
        out_specs=(pl.BlockSpec((rt, 1), lambda r, l: (r, 0)),
                   pl.BlockSpec((rt, 1), lambda r, l: (r, 0))),
        compiler_params=_compiler_params(("parallel", "arbitrary")),
        cost_estimate=pl.CostEstimate(
            flops=3 * numel, transcendentals=0, bytes_accessed=numel * isz),
    )(xf)

    out = pl.pallas_call(
        functools.partial(_rownorm_apply_kernel, inv_cnt),
        out_shape=jax.ShapeDtypeStruct((R, HW), x.dtype),
        grid=grid,
        in_specs=[
            pl.BlockSpec((rt, lt), lambda r, l: (r, l)),
            pl.BlockSpec((rt, 1), lambda r, l: (r, 0)),
            pl.BlockSpec((rt, 1), lambda r, l: (r, 0)),
        ],
        out_specs=pl.BlockSpec((rt, lt), lambda r, l: (r, l)),
        compiler_params=_compiler_params(("parallel", "parallel")),
        cost_estimate=pl.CostEstimate(
            flops=3 * numel, transcendentals=R, bytes_accessed=2 * numel * isz),
    )(xf, sums, sumsqs)
    return out.reshape(N, C, H, W)


def groupnorm2d(x, gamma, beta, num_groups, max_block_elems=None):
    N, C, H, W = x.shape
    HW = H * W
    G = num_groups
    Cg = C // G
    R = N * G
    L = Cg * HW
    numel = R * L
    isz = jnp.dtype(x.dtype).itemsize
    budget = _BLOCK_BUDGET_ELEMS if max_block_elems is None else max_block_elems
    # gamma/beta blocks are activation-tile-sized here, so halve the per-block
    # budget to keep {x, out, gamma, beta} x double-buffer under the VMEM limit.
    budget = max(budget // 2, 1)
    sub = _sublane_multiple(x.dtype)

    # (N, C, H, W) -> (N*G, Cg*HW): contiguous reshape; stats per row (n, g).
    # Flattening (Cg, HW) into one lane-dense trailing dim keeps vregs/stores
    # fully packed even when Cg < 8 (or < 16 for bf16).
    xf = x.reshape(R, L)
    # Per-group affine rows: (G, Cg*HW) = C*HW floats (never activation-sized).
    g_flat = jnp.broadcast_to(
        gamma.reshape(G, Cg, 1).astype(jnp.float32), (G, Cg, HW)).reshape(G, L)
    b_flat = jnp.broadcast_to(
        beta.reshape(G, Cg, 1).astype(jnp.float32), (G, Cg, HW)).reshape(G, L)

    # Row tile: sublane-aligned (or full extent) AND a divisor or multiple of G
    # so the per-group affine rows are addressable with a static index_map.
    gp_ok = lambda d: (d % G == 0) or (G % d == 0)
    rt = _pick_tile(R, L, budget, sub_mult=sub, min_steps=_MIN_PARALLEL_STEPS,
                    extra=gp_ok)

    if rt % G == 0:
        # Each row block covers rt // G full batches worth of all groups.
        g_rows = jnp.tile(g_flat, (rt // G, 1))
        b_rows = jnp.tile(b_flat, (rt // G, 1))
        g_idx1 = lambda r: (0, 0)
        g_idx2 = lambda r, l: (0, l)
    else:  # G % rt == 0: row blocks map to contiguous group blocks.
        g_rows, b_rows = g_flat, b_flat
        gsteps = G // rt
        g_idx1 = lambda r: (r % gsteps, 0)
        g_idx2 = lambda r, l: (r % gsteps, l)

    inv_cnt = 1.0 / L

    if rt * L <= budget:
        out = pl.pallas_call(
            _rownorm_affine_onepass_kernel,
            out_shape=jax.ShapeDtypeStruct((R, L), x.dtype),
            grid=(R // rt,),
            in_specs=[
                pl.BlockSpec((rt, L), lambda r: (r, 0)),
                pl.BlockSpec((rt, L), g_idx1),
                pl.BlockSpec((rt, L), g_idx1),
            ],
            out_specs=pl.BlockSpec((rt, L), lambda r: (r, 0)),
            compiler_params=_compiler_params(("parallel",)),
            cost_estimate=pl.CostEstimate(
                flops=10 * numel, transcendentals=R,
                bytes_accessed=2 * numel * isz),
        )(xf, g_rows, b_rows)
        return out.reshape(N, C, H, W)

    # --- two-pass fallback: stats accumulated over L tiles, fused affine apply ---
    lt = _pick_tile(L, rt, budget, lane_mult=128)
    grid = (R // rt, L // lt)

    sums, sumsqs = pl.pallas_call(
        _row_stats_kernel,
        out_shape=(jax.ShapeDtypeStruct((R, 1), jnp.float32),
                   jax.ShapeDtypeStruct((R, 1), jnp.float32)),
        grid=grid,
        in_specs=[pl.BlockSpec((rt, lt), lambda r, l: (r, l))],
        out_specs=(pl.BlockSpec((rt, 1), lambda r, l: (r, 0)),
                   pl.BlockSpec((rt, 1), lambda r, l: (r, 0))),
        compiler_params=_compiler_params(("parallel", "arbitrary")),
        cost_estimate=pl.CostEstimate(
            flops=3 * numel, transcendentals=0, bytes_accessed=numel * isz),
    )(xf)

    out = pl.pallas_call(
        functools.partial(_rownorm_affine_apply_kernel, inv_cnt),
        out_shape=jax.ShapeDtypeStruct((R, L), x.dtype),
        grid=grid,
        in_specs=[
            pl.BlockSpec((rt, lt), lambda r, l: (r, l)),
            pl.BlockSpec((rt, 1), lambda r, l: (r, 0)),
            pl.BlockSpec((rt, 1), lambda r, l: (r, 0)),
            pl.BlockSpec((rt, lt), g_idx2),
            pl.BlockSpec((rt, lt), g_idx2),
        ],
        out_specs=pl.BlockSpec((rt, lt), lambda r, l: (r, l)),
        compiler_params=_compiler_params(("parallel", "parallel")),
        cost_estimate=pl.CostEstimate(
            flops=5 * numel, transcendentals=R, bytes_accessed=2 * numel * isz),
    )(xf, sums, sumsqs, g_rows, b_rows)
    return out.reshape(N, C, H, W)


def normalization_wrapper_2d(x, channels, normalization, gamma=None, beta=None):
    """Forward pass of NormalizationWrapper2d."""
    assert normalization in [None, "bn", "gn", "in"]
    if normalization is None:
        return x  # nn.Identity
    if normalization == "bn":
        return batchnorm2d(x, gamma, beta)
    if normalization == "in":
        return instancenorm2d(x)  # InstanceNorm2d default: affine=False
    # 'gn'
    group_size = [gs for gs in [8, 4, 2, 1] if channels % gs == 0][0]
    num_groups = channels // group_size
    return groupnorm2d(x, gamma, beta, num_groups)


# ------------------------------------------------------- pure-JAX references
def _ref_bn(x, gamma, beta):
    mean = jnp.mean(x, axis=(0, 2, 3), keepdims=True)
    var = jnp.mean(jnp.square(x - mean), axis=(0, 2, 3), keepdims=True)
    return ((x - mean) * lax.rsqrt(var + EPS) * gamma.reshape(1, -1, 1, 1)
            + beta.reshape(1, -1, 1, 1))


def _ref_in(x):
    mean = jnp.mean(x, axis=(2, 3), keepdims=True)
    var = jnp.mean(jnp.square(x - mean), axis=(2, 3), keepdims=True)
    return (x - mean) * lax.rsqrt(var + EPS)


def _ref_gn(x, gamma, beta, num_groups):
    N, C, H, W = x.shape
    xg = x.reshape(N, num_groups, C // num_groups, H, W)
    mean = jnp.mean(xg, axis=(2, 3, 4), keepdims=True)
    var = jnp.mean(jnp.square(xg - mean), axis=(2, 3, 4), keepdims=True)
    y = ((xg - mean) * lax.rsqrt(var + EPS)).reshape(N, C, H, W)
    return y * gamma.reshape(1, -1, 1, 1) + beta.reshape(1, -1, 1, 1)


# ------------------------------------------------------------------------ main
if __name__ == "__main__":
    key = jax.random.PRNGKey(0)
    k_x, k_g, k_b = jax.random.split(key, 3)

    N, C, H, W = 2, 4, 16, 16
    x = jax.random.normal(k_x, (N, C, H, W), dtype=jnp.float32)

    # Affine params (PyTorch default init is gamma=1, beta=0; use deterministic
    # random values to also exercise the affine path).
    gamma = 1.0 + 0.1 * jax.random.normal(k_g, (C,), dtype=jnp.float32)
    beta = 0.1 * jax.random.normal(k_b, (C,), dtype=jnp.float32)

    # normalization=None -> Identity
    y_id = normalization_wrapper_2d(x, C, None)
    assert jnp.array_equal(y_id, x)

    # normalization='bn' -> BatchNorm2d (training-mode batch stats), single-pass path
    y_bn = jax.block_until_ready(normalization_wrapper_2d(x, C, "bn", gamma, beta))
    assert jnp.allclose(y_bn, _ref_bn(x, gamma, beta), atol=1e-4, rtol=1e-4)

    # BatchNorm large-activation fallback (forced with a tiny block budget):
    # exercises the two-pass + HW-tiled stats/apply path.
    y_bn2 = jax.block_until_ready(batchnorm2d(x, gamma, beta, max_block_elems=512))
    assert jnp.allclose(y_bn2, _ref_bn(x, gamma, beta), atol=1e-4, rtol=1e-4)

    # normalization='in' -> InstanceNorm2d (no affine), single-pass path
    y_in = jax.block_until_ready(normalization_wrapper_2d(x, C, "in"))
    assert jnp.allclose(y_in, _ref_in(x), atol=1e-4, rtol=1e-4)

    # InstanceNorm fallback (forced): two-pass with HW tiling
    y_in2 = jax.block_until_ready(instancenorm2d(x, max_block_elems=512))
    assert jnp.allclose(y_in2, _ref_in(x), atol=1e-4, rtol=1e-4)

    # bf16 input exercises the dtype-aware sublane tiling (stats still in f32)
    y_inb = jax.block_until_ready(instancenorm2d(x.astype(jnp.bfloat16)))
    assert jnp.allclose(y_inb.astype(jnp.float32), _ref_in(x), atol=5e-2, rtol=5e-2)

    # normalization='gn' -> GroupNorm(channels // group_size, channels), single-pass path
    group_size = [gs for gs in [8, 4, 2, 1] if C % gs == 0][0]
    num_groups = C // group_size
    y_gn = jax.block_until_ready(normalization_wrapper_2d(x, C, "gn", gamma, beta))
    assert jnp.allclose(y_gn, _ref_gn(x, gamma, beta, num_groups), atol=1e-4, rtol=1e-4)

    # GroupNorm fallback (forced): two-pass with L tiling + fused affine apply
    y_gn2 = jax.block_until_ready(
        groupnorm2d(x, gamma, beta, num_groups, max_block_elems=1024))
    assert jnp.allclose(y_gn2, _ref_gn(x, gamma, beta, num_groups), atol=1e-4, rtol=1e-4)

    print("KERNEL_OK")
</pallas_src>

<mosaic_0001>
module attributes {stable_mosaic.version = 11 : i64} {
  func.func @_bn_onepass_kernel(%arg0: i32, %arg1: memref<2x4x256xf32, #tpu.memory_space<vmem>>, %arg2: memref<1x4x1xf32, #tpu.memory_space<vmem>>, %arg3: memref<1x4x1xf32, #tpu.memory_space<vmem>>, %arg4: memref<2x4x256xf32, #tpu.memory_space<vmem>>) attributes {dimension_semantics = [#tpu.dimension_semantics<parallel>], iteration_bounds = array<i64: 1>, scalar_prefetch = 0 : i64, scratch_operands = 0 : i64, tpu.core_type = #tpu.core_type<tc>, window_params = [{transform_indices = @transform_0, window_bounds = array<i64: 2, 4, 256>}, {transform_indices = @transform_1, window_bounds = array<i64: 1, 4, 1>}, {transform_indices = @transform_2, window_bounds = array<i64: 1, 4, 1>}, {transform_indices = @transform_3, window_bounds = array<i64: 2, 4, 256>}]} {
    %c0 = arith.constant 0 : index
    %c0_0 = arith.constant 0 : index
    %c0_1 = arith.constant 0 : index
    %0 = vector.load %arg1[%c0, %c0_0, %c0_1] : memref<2x4x256xf32, #tpu.memory_space<vmem>>, vector<2x4x256xf32>
    %cst = arith.constant dense<0.000000e+00> : vector<2x4xf32>
    %1 = vector.multi_reduction <add>, %0, %cst [2] : vector<2x4x256xf32> to vector<2x4xf32>
    %2 = vector.shape_cast %1 : vector<2x4xf32> to vector<2x4x1xf32>
    %cst_2 = arith.constant dense<0.000000e+00> : vector<4x1xf32>
    %3 = vector.multi_reduction <add>, %2, %cst_2 [0] : vector<2x4x1xf32> to vector<4x1xf32>
    %4 = vector.shape_cast %3 : vector<4x1xf32> to vector<1x4x1xf32>
    %5 = arith.mulf %0, %0 : vector<2x4x256xf32>
    %cst_3 = arith.constant dense<0.000000e+00> : vector<2x4xf32>
    %6 = vector.multi_reduction <add>, %5, %cst_3 [2] : vector<2x4x256xf32> to vector<2x4xf32>
    %7 = vector.shape_cast %6 : vector<2x4xf32> to vector<2x4x1xf32>
    %cst_4 = arith.constant dense<0.000000e+00> : vector<4x1xf32>
    %8 = vector.multi_reduction <add>, %7, %cst_4 [0] : vector<2x4x1xf32> to vector<4x1xf32>
    %9 = vector.shape_cast %8 : vector<4x1xf32> to vector<1x4x1xf32>
    %cst_5 = arith.constant 0.001953125 : f32
    %10 = vector.broadcast %cst_5 : f32 to vector<1x4x1xf32>
    %11 = arith.mulf %4, %10 : vector<1x4x1xf32>
    %cst_6 = arith.constant 0.001953125 : f32
    %12 = vector.broadcast %cst_6 : f32 to vector<1x4x1xf32>
    %13 = arith.mulf %9, %12 : vector<1x4x1xf32>
    %14 = arith.mulf %11, %11 : vector<1x4x1xf32>
    %15 = arith.subf %13, %14 : vector<1x4x1xf32>
    %cst_7 = arith.constant 0.000000e+00 : f32
    %16 = vector.broadcast %cst_7 : f32 to vector<1x4x1xf32>
    %17 = arith.maximumf %15, %16 : vector<1x4x1xf32>
    %c0_8 = arith.constant 0 : index
    %c0_9 = arith.constant 0 : index
    %c0_10 = arith.constant 0 : index
    %18 = vector.load %arg2[%c0_8, %c0_9, %c0_10] : memref<1x4x1xf32, #tpu.memory_space<vmem>>, vector<1x4x1xf32>
    %cst_11 = arith.constant 9.99999974E-6 : f32
    %19 = vector.broadcast %cst_11 : f32 to vector<1x4x1xf32>
    %20 = arith.addf %17, %19 : vector<1x4x1xf32>
    %21 = math.rsqrt %20 : vector<1x4x1xf32>
    %22 = arith.mulf %18, %21 : vector<1x4x1xf32>
    %c0_12 = arith.constant 0 : index
    %c0_13 = arith.constant 0 : index
    %c0_14 = arith.constant 0 : index
    %23 = vector.load %arg3[%c0_12, %c0_13, %c0_14] : memref<1x4x1xf32, #tpu.memory_space<vmem>>, vector<1x4x1xf32>
    %24 = arith.mulf %11, %22 : vector<1x4x1xf32>
    %25 = arith.subf %23, %24 : vector<1x4x1xf32>
    %26 = vector.broadcast %22 : vector<1x4x1xf32> to vector<2x4x256xf32>
    %27 = arith.mulf %0, %26 : vector<2x4x256xf32>
    %28 = vector.broadcast %25 : vector<1x4x1xf32> to vector<2x4x256xf32>
    %29 = arith.addf %27, %28 : vector<2x4x256xf32>
    %c0_15 = arith.constant 0 : index
    %c0_16 = arith.constant 0 : index
    %c0_17 = arith.constant 0 : index
    %30 = vector.load %arg4[%c0_15, %c0_16, %c0_17] : memref<2x4x256xf32, #tpu.memory_space<vmem>>, vector<2x4x256xf32>
    tpu.vector_store %arg4[%c0_15, %c0_16, %c0_17], %29 {strides = array<i32>} : memref<2x4x256xf32, #tpu.memory_space<vmem>>, vector<2x4x256xf32>,
    return
  }
  func.func @transform_0(%arg0: i32) -> (i32, i32, i32) {
    %c0_i32 = arith.constant 0 : i32
    %c0_i32_0 = arith.constant 0 : i32
    %c0_i32_1 = arith.constant 0 : i32
    return %c0_i32, %arg0, %c0_i32_0 : i32, i32, i32
  }
  func.func @transform_1(%arg0: i32) -> (i32, i32, i32) {
    %c0_i32 = arith.constant 0 : i32
    %c0_i32_0 = arith.constant 0 : i32
    %c0_i32_1 = arith.constant 0 : i32
    return %c0_i32, %arg0, %c0_i32_0 : i32, i32, i32
  }
  func.func @transform_2(%arg0: i32) -> (i32, i32, i32) {
    %c0_i32 = arith.constant 0 : i32
    %c0_i32_0 = arith.constant 0 : i32
    %c0_i32_1 = arith.constant 0 : i32
    return %c0_i32, %arg0, %c0_i32_0 : i32, i32, i32
  }
  func.func @transform_3(%arg0: i32) -> (i32, i32, i32) {
    %c0_i32 = arith.constant 0 : i32
    %c0_i32_0 = arith.constant 0 : i32
    %c0_i32_1 = arith.constant 0 : i32
    return %c0_i32, %arg0, %c0_i32_0 : i32, i32, i32
  }
}

</mosaic_0001>

<llo_original>
// kernel: tpu_custom_call.1
$region0: #{tpu_custom_call.1}
  #allocation0 [shape = 'u32[]', space=smem, size = 0x4, offset = 0x4, fixed_abs, tag = 'smem constant byte address 0x4 - core index']
  #allocation1 [shape = 'u32[144,128]{1,0:T(1,128)}', space=vmem, size = 0x12000, scoped, tag = 'internal scratch']
  %s0 = inlined_call_operand.hbm [shape: f32[2,4,256], index: 0, kind: input, shape index: {}]
  %s1 = inlined_call_operand.vmem [shape: f32[1,4,1], index: 1, kind: input, shape index: {}]
  %s2 = inlined_call_operand.vmem [shape: f32[1,4,1], index: 2, kind: input, shape index: {}]
  %s3 = inlined_call_operand.hbm [shape: f32[2,4,256], index: 3, kind: output, shape index: {}]
  %s4 = sld [smem:[#allocation0]]
  $region26: #{tpu_custom_call.1} parent=0
    _
  %s6 = ssub.s32 1, %s4
  %s7 = scalar_select 0, %s6, %s4
  $region1: #{tpu_custom_call.1} parent=0
    #allocation2 [shape = 'u8[8192]{0}', space=vmem, size = 0x2000, scoped, tag = 'input window, operand 0, single buffered']
    #allocation3 [shape = 's32[1]{0}', space=sflag, size = 0x4, scoped, tag = 'scoped memory for tpu_custom_call.1']
    #allocation4 [shape = 's32[1]{0}', space=sflag, size = 0x4, scoped, tag = 'scoped memory for tpu_custom_call.1']
    #allocation5 [shape = 'u8[8192]{0}', space=vmem, size = 0x2000, scoped, tag = 'output window, operand 0, single buffered']
    %8 = vsyncpa [#allocation3], 0
    %9 = vsyncpa [#allocation4], 0
    // Predicated region
    $region2: #{tpu_custom_call.1} parent=1 // pred_check
      _
    $region3: #{tpu_custom_call.1} parent=1 // pred_check_branch
      %11 = sbr.rel (0) target = $region5
    $region4: #{tpu_custom_call.1} parent=1 // pred_region
      %s13 = ssub.s32 256, 256
      %14 = vsyncadd [#allocation3], %s13
      %s15 = sshll.u32 [#allocation2], 4
      %s16 = int_to_ptr.vmem [resolvable:$true] %s15
      %21 = dma.hbm_to_vmem [thread:$0]  %s0, 256, %s16, [#allocation3], 128, 128, 8
    $region5: #{tpu_custom_call.1} parent=1 // pred_fallthru
      _
    // Predicated region
    $region6: #{tpu_custom_call.1} parent=1 // pred_check
      _
    $region7: #{tpu_custom_call.1} parent=1 // pred_check_branch
      %23 = sbr.rel (0) target = $region9
    $region8: #{tpu_custom_call.1} parent=1 // pred_region
      _
    $region9: #{tpu_custom_call.1} parent=1 // pred_fallthru
      _
    // Predicated region
    $region10: #{tpu_custom_call.1} parent=1 // pred_check
      _
    $region11: #{tpu_custom_call.1} parent=1 // pred_check_branch
      %25 = sbr.rel (0) target = $region13
    $region12: #{tpu_custom_call.1} parent=1 // pred_region
      _
    $region13: #{tpu_custom_call.1} parent=1 // pred_fallthru
      _
    // Predicated region
    $region14: #{tpu_custom_call.1} parent=1 // pred_check
      _
    $region15: #{tpu_custom_call.1} parent=1 // pred_check_branch
      %27 = sbr.rel (0) target = $region17
    $region16: #{tpu_custom_call.1} parent=1 // pred_region
      %28 = dma.done [#allocation3], 256
    $region17: #{tpu_custom_call.1} parent=1 // pred_fallthru
      _
    %v29 = vld [vmem:[#allocation2] sm:$0xff]
    %v30 = vld [vmem:[#allocation2 + $0x8] sm:$0xff]
    %v33 = vcombine.high %v29, %v29
    %v34 = vcombine.high %v30, %v30
    %vm37 = vcmask 1043456
    %v38 = vsel %vm37, %v29, 0.0
    %v39 = vsel %vm37, %v33, 0.0
    %v40 = vadd.f32 %v38, %v39
    %41 = vadd.xlane.f32.xlu0 %v40
    %v42 = vpop.xlane.xlu0 %41
    %v43 = vsel %vm37, %v30, 0.0
    %v44 = vsel %vm37, %v34, 0.0
    %v45 = vadd.f32 %v43, %v44
    %46 = vadd.xlane.f32.xlu0 %v45
    %v47 = vpop.xlane.xlu0 %46
    %v48 = vsel %vm37, %v42, 0.0
    %v49 = vsel %vm37, %v47, 0.0
    %v50 = vadd.f32 %v48, %v49
    %v51 = vmul.f32 %v29, %v29
    %v52 = vmul.f32 %v30, %v30
    %v55 = vcombine.high %v51, %v51
    %v56 = vcombine.high %v52, %v52
    %v59 = vsel %vm37, %v51, 0.0
    %v60 = vsel %vm37, %v55, 0.0
    %v61 = vadd.f32 %v59, %v60
    %62 = vadd.xlane.f32.xlu0 %v61
    %v63 = vpop.xlane.xlu0 %62
    %v64 = vsel %vm37, %v52, 0.0
    %v65 = vsel %vm37, %v56, 0.0
    %v66 = vadd.f32 %v64, %v65
    %67 = vadd.xlane.f32.xlu0 %v66
    %v68 = vpop.xlane.xlu0 %67
    %v69 = vsel %vm37, %v63, 0.0
    %v70 = vsel %vm37, %v68, 0.0
    %v71 = vadd.f32 %v69, %v70
    %v72 = vmul.f32 %v50, 0.001953125
    %v73 = vmul.f32 %v71, 0.001953125
    %v74 = vmul.f32 %v72, %v72
    %v75 = vsub.f32 %v73, %v74
    %v76 = vmax.f32 %v75, 0.0
    %v77 = vld [vmem:[%s1] sm:$0xf]
    %v78 = vadd.f32 %v76, 1e-05
    %v79 = vrsqrt.pop %v78
    %v80 = vmul.f32 %v77, %v79
    %v81 = vld [vmem:[%s2] sm:$0xf]
    %v82 = vmul.f32 %v72, %v80
    %v83 = vsub.f32 %v81, %v82
    %85 = vset.pattern.permute.xlu0 0
    %86 = vperm.xlu0 %85, %v80
    %v87 = vpop.permute.xlu0 %86
    %v89 = vunpack.c.l.s4 839922192
    %v90 = vunpack.c.0.s8 %v89
    %v91 = vlaneseq
    %v92 = vshrl.u32 %v91, 7
    %v93 = vsub.s32 %v90, %v92
    %v94 = vrot.slane %v87, %v93
    %v96 = vmul.f32 %v29, %v94
    %v97 = vmul.f32 %v30, %v94
    %99 = vset.pattern.permute.xlu0 0
    %100 = vperm.xlu0 %99, %v83
    %v101 = vpop.permute.xlu0 %100
    %v103 = vunpack.c.l.s4 839922192
    %v104 = vunpack.c.0.s8 %v103
    %v105 = vlaneseq
    %v106 = vshrl.u32 %v105, 7
    %v107 = vsub.s32 %v104, %v106
    %v108 = vrot.slane %v101, %v107
    %v110 = vadd.f32 %v96, %v108
    %v111 = vadd.f32 %v97, %v108
    %112 = vst [vmem:[#allocation5] sm:$0xff] %v110
    %113 = vst [vmem:[#allocation5 + $0x8] sm:$0xff] %v111
    // Predicated region
    $region18: #{tpu_custom_call.1} parent=1 // pred_check
      _
    $region19: #{tpu_custom_call.1} parent=1 // pred_check_branch
      %115 = sbr.rel (0) target = $region21
    $region20: #{tpu_custom_call.1} parent=1 // pred_region
      %s117 = ssub.s32 256, 256
      %118 = vsyncadd [#allocation4], %s117
      %s119 = sshll.u32 [#allocation5], 4
      %s120 = int_to_ptr.vmem [resolvable:$true] %s119
      %125 = dma.vmem_to_hbm [thread:$0]  %s120, 256, %s3, [#allocation4], 128, 128, 8
    $region21: #{tpu_custom_call.1} parent=1 // pred_fallthru
      _
    // Predicated region
    $region22: #{tpu_custom_call.1} parent=1 // pred_check
      _
    $region23: #{tpu_custom_call.1} parent=1 // pred_check_branch
      %127 = sbr.rel (0) target = $region25
    $region24: #{tpu_custom_call.1} parent=1 // pred_region
      %128 = dma.done [#allocation4], 256
    $region25: #{tpu_custom_call.1} parent=1 // pred_fallthru
      _
    %129 = vsyncpa [#allocation3], 1
    %130 = vsyncpa [#allocation4], 1

</llo_original>
